<compile_context>
chip_gen: v7x
topology: tpu7x:2x2x1
jax: 0.10.0
libtpu: 0.0.40
codegen_flags: <defaults>
</compile_context>

<pallas_src>
import functools
import math

import jax
import jax.numpy as jnp
import numpy as np
from jax.experimental import pallas as pl
from jax.experimental.pallas import tpu as pltpu

_CONT_WEIGHT = 0.1                 # self.cont_weight in the PyTorch module
_LOG_EPS = math.log(1e-8)          # log of the module's clamp floor
_PAD_LOGIT = -50.0                 # pad logit: sigmoid -> ~2e-22 (clamped to 1e-8);
                                   # with pad target 0 the BCE contribution of a
                                   # padded element is ~ -exp(-50) ~ 2e-22 (negligible)
_NUM_SPLITS = 2                    # leading "parallel" grid axis (both TCs on v7x)
_LANE = 128
_SUBLANE = 8


def _cdiv(a, b):
    return -(-a // b)


def _round_up(a, b):
    return _cdiv(a, b) * b


def _bce_var_loss_kernel(w_ref, dh_m_ref, dw_m_ref, yp_ref, yr_ref, out_ref, *,
                         inv_n_bce, inv_n_dh, inv_n_dw, cont_weight, width):
    # w_ref:     SMEM (2,)            class weights [w0, w1]
    # dh_m_ref:  VMEM (1, L)          static mask for vertical diffs   (f32 0/1)
    # dw_m_ref:  VMEM (1, L)          static mask for horizontal diffs (f32 0/1)
    # yp_ref:    VMEM (TILE_NC, L)    logits tile (flat spatial, lane-dense)
    # yr_ref:    VMEM (TILE_NC, L)    targets tile
    # out_ref:   VMEM (1, 1, L)       per-split lane-wise partial loss accumulator
    i = pl.program_id(1)             # inner reduction ("arbitrary") axis

    @pl.when(i == 0)
    def _init():
        out_ref[...] = jnp.zeros_like(out_ref)

    yp = yp_ref[...].astype(jnp.float32)
    yr = yr_ref[...].astype(jnp.float32)

    # Stable log-sigmoid (one exp + one log per element):
    #   log(sigmoid(x))     = min(x, 0)  - log(1 + exp(-|x|))
    #   log(1 - sigmoid(x)) = min(-x, 0) - log(1 + exp(-|x|))
    # The module's clamp of sigmoid to [1e-8, 1-1e-8] is reproduced by flooring
    # the log terms at log(1e-8) (also avoids -inf/NaN for saturated logits).
    e = jnp.exp(-jnp.abs(yp))                   # in (0, 1], never overflows
    log_denom = jnp.log(1.0 + e)
    log_yhat = jnp.maximum(jnp.minimum(yp, 0.0) - log_denom, _LOG_EPS)
    log_1m_yhat = jnp.maximum(jnp.minimum(-yp, 0.0) - log_denom, _LOG_EPS)

    # sigmoid for the total-variation term: approx reciprocal (EUP slot) plus
    # one Newton step keeps it ~f32-accurate while staying off the VALU.
    d = 1.0 + e
    r = pl.reciprocal(d, approx=True)
    r = r * (2.0 - d * r)
    y_hat = jnp.where(yp >= 0.0, r, e * r)
    y_hat = jnp.clip(y_hat, 1e-8, 1.0 - 1e-8)   # faithful to the module clamp

    # Unweighted BCE terms; padded rows/cols have (yp=-50, yr=0) so their
    # contribution is 0 (term1) and ~ -exp(-50) (term2) -> negligible, no mask.
    t1 = yr * log_yhat
    t2 = (1.0 - yr) * log_1m_yhat

    # Total-variation diffs in the lane-dense flat layout (flat = h*W + w):
    #   horizontal: neighbour = roll(+1)  -> pairs ((h, w-1), (h, w)), mask w != 0
    #   vertical:   neighbour = roll(+W)  -> pairs ((h-1, w), (h, w)), mask flat >= W
    # The masks (built in the wrapper) also kill lane-padding columns and the
    # wrap-around pairs; padded rows are constant so they contribute exactly 0.
    nbr_w = pltpu.roll(y_hat, shift=1, axis=1)
    nbr_h = pltpu.roll(y_hat, shift=width, axis=1)
    abs_dw = jnp.abs(y_hat - nbr_w) * dw_m_ref[...]
    abs_dh = jnp.abs(y_hat - nbr_h) * dh_m_ref[...]

    # Reduce only over the row (sublane) axis per step; the lane axis is
    # reduced once in the wrapper (keeps the steady-state loop cheap and the
    # accumulation tree-shaped for precision).
    s_t1 = jnp.sum(t1, axis=0, keepdims=True)          # (1, L)
    s_t2 = jnp.sum(t2, axis=0, keepdims=True)
    s_dh = jnp.sum(abs_dh, axis=0, keepdims=True)
    s_dw = jnp.sum(abs_dw, axis=0, keepdims=True)

    w0 = w_ref[0]
    w1 = w_ref[1]
    contrib = (-(w1 * s_t1 + w0 * s_t2)) * inv_n_bce \
              + cont_weight * (s_dh * inv_n_dh + s_dw * inv_n_dw)
    out_ref[...] += contrib[None]


def _vmem_limit_bytes():
    try:
        cap = int(pltpu.get_tpu_info().vmem_capacity_bytes)
    except Exception:
        cap = 64 * 1024 * 1024      # conservative fallback (v7x per-TC VMEM)
    # Half the physical capacity, never above 64 MiB:
    #   v7x (64 MiB VMEM/TC)  -> 32 MiB;   v5e / v6e (128 MiB) -> 64 MiB.
    return min(cap // 2, 64 * 1024 * 1024)


def _choose_tiling(nc, row_pair_bytes, num_splits, vmem_limit):
    """Rows per tile (multiple of 8) and pipeline steps per split."""
    # 2 inputs x 2 pipeline buffers must fit in half the limit; the rest is
    # headroom for the output block and compiler temporaries.  Footprint is
    # exact because rows are a multiple of 8 and lanes a multiple of 128.
    max_rows = (vmem_limit // (4 * row_pair_bytes)) // _SUBLANE * _SUBLANE
    max_rows = max(max_rows, _SUBLANE)
    rows_per_split = _cdiv(nc, num_splits)
    tile = min(max_rows, _round_up(rows_per_split, _SUBLANE))
    steps = _cdiv(rows_per_split, tile)
    # Shrink the tile to the smallest multiple of 8 that still covers the
    # split in `steps` steps -> minimal row padding in the wrapper.
    tile = _round_up(_cdiv(rows_per_split, steps), _SUBLANE)
    return tile, steps


def bce_var_loss(y_pred, y_real, weight, cont_weight=_CONT_WEIGHT):
    N, C, H, W = y_pred.shape
    nc = N * C
    hw = H * W
    lanes = _round_up(hw, _LANE)

    yp = y_pred.reshape(nc, hw)
    yr = y_real.reshape(nc, hw)

    row_pair_bytes = lanes * (jnp.dtype(yp.dtype).itemsize +
                              jnp.dtype(yr.dtype).itemsize)
    vmem_limit = _vmem_limit_bytes()
    tile_nc, steps = _choose_tiling(nc, row_pair_bytes, _NUM_SPLITS, vmem_limit)

    nc_padded = _NUM_SPLITS * steps * tile_nc
    pad_rows = nc_padded - nc
    pad_lanes = lanes - hw
    if pad_rows or pad_lanes:
        # Pad logits with a large negative value and targets with 0 so padded
        # elements contribute ~0 to every partial sum (no in-kernel row masks).
        yp = jnp.pad(yp, ((0, pad_rows), (0, pad_lanes)),
                     constant_values=_PAD_LOGIT)
        yr = jnp.pad(yr, ((0, pad_rows), (0, pad_lanes)), constant_values=0)

    # Static column masks for the flattened total-variation diffs.
    cols = np.arange(lanes)
    dh_mask = ((cols >= W) & (cols < hw)).astype(np.float32).reshape(1, lanes)
    dw_mask = (((cols % W) != 0) & (cols < hw)).astype(np.float32).reshape(1, lanes)

    w = jnp.asarray(weight, jnp.float32)

    n_dh = nc * (H - 1) * W
    n_dw = nc * H * (W - 1)
    kernel = functools.partial(
        _bce_var_loss_kernel,
        inv_n_bce=1.0 / float(nc * hw),
        inv_n_dh=(1.0 / float(n_dh)) if n_dh else 0.0,
        inv_n_dw=(1.0 / float(n_dw)) if n_dw else 0.0,
        cont_weight=float(cont_weight),
        width=int(W),
    )

    partials = pl.pallas_call(
        kernel,
        out_shape=jax.ShapeDtypeStruct((_NUM_SPLITS, 1, lanes), jnp.float32),
        grid_spec=pltpu.PrefetchScalarGridSpec(
            num_scalar_prefetch=0,
            grid=(_NUM_SPLITS, steps),
            in_specs=[
                # class weights: whole (2,) vector resident in SMEM
                pl.BlockSpec(memory_space=pltpu.MemorySpace.SMEM),
                # static diff masks: single (1, L) block, constant across grid
                pl.BlockSpec((1, lanes), lambda s, i: (0, 0)),
                pl.BlockSpec((1, lanes), lambda s, i: (0, 0)),
                # logits / targets: tiled over padded NC rows, lane-dense
                pl.BlockSpec((tile_nc, lanes), lambda s, i: (s * steps + i, 0)),
                pl.BlockSpec((tile_nc, lanes), lambda s, i: (s * steps + i, 0)),
            ],
            # per-split lane-wise accumulator, resident across the inner axis
            out_specs=pl.BlockSpec((1, 1, lanes), lambda s, i: (s, 0, 0)),
        ),
        compiler_params=pltpu.CompilerParams(
            dimension_semantics=("parallel", "arbitrary"),
            vmem_limit_bytes=vmem_limit,
        ),
    )(w, jnp.asarray(dh_mask), jnp.asarray(dw_mask), yp, yr)

    # Tiny final reduction + combine done by XLA (tree-shaped, good precision).
    return jnp.sum(partials)


def bce_var_loss_ref(y_pred, y_real, weight, cont_weight=_CONT_WEIGHT):
    """Pure-JAX reference mirroring the PyTorch module."""
    y_hat = jnp.clip(jax.nn.sigmoid(y_pred), 1e-8, 1.0 - 1e-8)
    term1 = y_hat[:, :, 1:, :] - y_hat[:, :, :-1, :]
    term2 = y_hat[:, :, :, 1:] - y_hat[:, :, :, :-1]
    l_cont = jnp.mean(jnp.abs(term1)) + jnp.mean(jnp.abs(term2))
    t1 = y_real * jnp.log(y_hat) * weight[1]
    t2 = (1.0 - y_real) * jnp.log(1.0 - y_hat) * weight[0]
    bce = -jnp.mean(t1 + t2)
    return bce + cont_weight * l_cont


if __name__ == "__main__":
    key = jax.random.PRNGKey(0)
    k1, k2 = jax.random.split(key)

    N, C, H, W = 2, 4, 16, 16
    y_pred = jax.random.normal(k1, (N, C, H, W), dtype=jnp.float32)
    y_real = jax.random.bernoulli(k2, 0.5, (N, C, H, W)).astype(jnp.float32)

    # deterministic class weights (module takes `weight` in __init__)
    weight = jnp.array([1.0, 2.0], dtype=jnp.float32)

    loss = jax.block_until_ready(bce_var_loss(y_pred, y_real, weight))
    loss_ref = jax.block_until_ready(bce_var_loss_ref(y_pred, y_real, weight))

    assert jnp.allclose(loss, loss_ref, rtol=2e-5, atol=2e-5), (loss, loss_ref)
    print("KERNEL_OK")
</pallas_src>

<mosaic_0001>
module attributes {stable_mosaic.version = 11 : i64} {
  func.func @_bce_var_loss_kernel(%arg0: i32, %arg1: i32, %arg2: memref<2xf32, #tpu.memory_space<smem>>, %arg3: memref<1x256xf32, #tpu.memory_space<vmem>>, %arg4: memref<1x256xf32, #tpu.memory_space<vmem>>, %arg5: memref<8x256xf32, #tpu.memory_space<vmem>>, %arg6: memref<8x256xf32, #tpu.memory_space<vmem>>, %arg7: memref<1x1x256xf32, #tpu.memory_space<vmem>>) attributes {dimension_semantics = [#tpu.dimension_semantics<parallel>, #tpu.dimension_semantics<arbitrary>], iteration_bounds = array<i64: 2, 1>, scalar_prefetch = 0 : i64, scratch_operands = 0 : i64, tpu.core_type = #tpu.core_type<tc>, window_params = [{transform_indices = @transform_0, window_bounds = array<i64: 2>}, {pipeline_mode = #tpu.pipeline_mode<synchronous>, transform_indices = @transform_1, window_bounds = array<i64: 1, 256>}, {pipeline_mode = #tpu.pipeline_mode<synchronous>, transform_indices = @transform_2, window_bounds = array<i64: 1, 256>}, {transform_indices = @transform_3, window_bounds = array<i64: 8, 256>}, {transform_indices = @transform_4, window_bounds = array<i64: 8, 256>}, {transform_indices = @transform_5, window_bounds = array<i64: 1, 1, 256>}]} {
    %c0_i32 = arith.constant 0 : i32
    %0 = arith.cmpi eq, %arg1, %c0_i32 : i32
    %1 = arith.extui %0 : i1 to i32
    %c0_i32_0 = arith.constant 0 : i32
    %2 = arith.cmpi ne, %1, %c0_i32_0 : i32
    scf.if %2 {
      %cst_36 = arith.constant 0.000000e+00 : f32
      %86 = vector.broadcast %cst_36 : f32 to vector<1x1x256xf32>
      %c0_37 = arith.constant 0 : index
      %c0_38 = arith.constant 0 : index
      %c0_39 = arith.constant 0 : index
      %87 = vector.load %arg7[%c0_37, %c0_38, %c0_39] : memref<1x1x256xf32, #tpu.memory_space<vmem>>, vector<1x1x256xf32>
      tpu.vector_store %arg7[%c0_37, %c0_38, %c0_39], %86 {strides = array<i32>} : memref<1x1x256xf32, #tpu.memory_space<vmem>>, vector<1x1x256xf32>,
    } else {
    }
    %c0 = arith.constant 0 : index
    %c0_1 = arith.constant 0 : index
    %3 = vector.load %arg5[%c0, %c0_1] : memref<8x256xf32, #tpu.memory_space<vmem>>, vector<8x256xf32>
    %c0_2 = arith.constant 0 : index
    %c0_3 = arith.constant 0 : index
    %4 = vector.load %arg6[%c0_2, %c0_3] : memref<8x256xf32, #tpu.memory_space<vmem>>, vector<8x256xf32>
    %5 = math.absf %3 : vector<8x256xf32>
    %cst = arith.constant 0.000000e+00 : f32
    %6 = vector.broadcast %cst : f32 to vector<8x256xf32>
    %7 = arith.subf %6, %5 : vector<8x256xf32>
    %8 = math.exp %7 : vector<8x256xf32>
    %cst_4 = arith.constant 1.000000e+00 : f32
    %9 = vector.broadcast %cst_4 : f32 to vector<8x256xf32>
    %10 = arith.addf %9, %8 : vector<8x256xf32>
    %11 = math.log %10 : vector<8x256xf32>
    %cst_5 = arith.constant 0.000000e+00 : f32
    %12 = vector.broadcast %cst_5 : f32 to vector<8x256xf32>
    %13 = arith.minimumf %3, %12 : vector<8x256xf32>
    %14 = arith.subf %13, %11 : vector<8x256xf32>
    %cst_6 = arith.constant -18.420681 : f32
    %15 = vector.broadcast %cst_6 : f32 to vector<8x256xf32>
    %16 = arith.maximumf %14, %15 : vector<8x256xf32>
    %cst_7 = arith.constant 0.000000e+00 : f32
    %17 = vector.broadcast %cst_7 : f32 to vector<8x256xf32>
    %18 = arith.subf %17, %3 : vector<8x256xf32>
    %cst_8 = arith.constant 0.000000e+00 : f32
    %19 = vector.broadcast %cst_8 : f32 to vector<8x256xf32>
    %20 = arith.minimumf %18, %19 : vector<8x256xf32>
    %21 = arith.subf %20, %11 : vector<8x256xf32>
    %cst_9 = arith.constant -18.420681 : f32
    %22 = vector.broadcast %cst_9 : f32 to vector<8x256xf32>
    %23 = arith.maximumf %21, %22 : vector<8x256xf32>
    %cst_10 = arith.constant 1.000000e+00 : f32
    %24 = vector.broadcast %cst_10 : f32 to vector<8x256xf32>
    %25 = arith.addf %24, %8 : vector<8x256xf32>
    %26 = tpu.reciprocal %25 {approx = true} : vector<8x256xf32> -> vector<8x256xf32>
    %27 = arith.mulf %25, %26 : vector<8x256xf32>
    %cst_11 = arith.constant 2.000000e+00 : f32
    %28 = vector.broadcast %cst_11 : f32 to vector<8x256xf32>
    %29 = arith.subf %28, %27 : vector<8x256xf32>
    %30 = arith.mulf %26, %29 : vector<8x256xf32>
    %cst_12 = arith.constant 0.000000e+00 : f32
    %31 = vector.broadcast %cst_12 : f32 to vector<8x256xf32>
    %32 = arith.cmpf oge, %3, %31 : vector<8x256xf32>
    %33 = arith.mulf %8, %30 : vector<8x256xf32>
    %34 = arith.select %32, %30, %33 : vector<8x256xi1>, vector<8x256xf32>
    %cst_13 = arith.constant 9.99999993E-9 : f32
    %cst_14 = arith.constant 1.000000e+00 : f32
    %35 = vector.broadcast %cst_13 : f32 to vector<8x256xf32>
    %36 = arith.maximumf %35, %34 : vector<8x256xf32>
    %37 = vector.broadcast %cst_14 : f32 to vector<8x256xf32>
    %38 = arith.minimumf %37, %36 : vector<8x256xf32>
    %39 = arith.mulf %4, %16 : vector<8x256xf32>
    %cst_15 = arith.constant 1.000000e+00 : f32
    %40 = vector.broadcast %cst_15 : f32 to vector<8x256xf32>
    %41 = arith.subf %40, %4 : vector<8x256xf32>
    %42 = arith.mulf %41, %23 : vector<8x256xf32>
    %c1_i32 = arith.constant 1 : i32
    %43 = tpu.dynamic_rotate %38 by %c1_i32 dim 1 : vector<8x256xf32>, i32 -> vector<8x256xf32>
    %c16_i32 = arith.constant 16 : i32
    %44 = tpu.dynamic_rotate %38 by %c16_i32 dim 1 : vector<8x256xf32>, i32 -> vector<8x256xf32>
    %45 = arith.subf %38, %43 : vector<8x256xf32>
    %46 = math.absf %45 : vector<8x256xf32>
    %c0_16 = arith.constant 0 : index
    %c0_17 = arith.constant 0 : index
    %47 = vector.load %arg4[%c0_16, %c0_17] : memref<1x256xf32, #tpu.memory_space<vmem>>, vector<1x256xf32>
    %48 = vector.broadcast %47 : vector<1x256xf32> to vector<8x256xf32>
    %49 = arith.mulf %46, %48 : vector<8x256xf32>
    %50 = arith.subf %38, %44 : vector<8x256xf32>
    %51 = math.absf %50 : vector<8x256xf32>
    %c0_18 = arith.constant 0 : index
    %c0_19 = arith.constant 0 : index
    %52 = vector.load %arg3[%c0_18, %c0_19] : memref<1x256xf32, #tpu.memory_space<vmem>>, vector<1x256xf32>
    %53 = vector.broadcast %52 : vector<1x256xf32> to vector<8x256xf32>
    %54 = arith.mulf %51, %53 : vector<8x256xf32>
    %cst_20 = arith.constant dense<0.000000e+00> : vector<256xf32>
    %55 = vector.multi_reduction <add>, %39, %cst_20 [0] : vector<8x256xf32> to vector<256xf32>
    %56 = vector.shape_cast %55 : vector<256xf32> to vector<1x256xf32>
    %cst_21 = arith.constant dense<0.000000e+00> : vector<256xf32>
    %57 = vector.multi_reduction <add>, %42, %cst_21 [0] : vector<8x256xf32> to vector<256xf32>
    %58 = vector.shape_cast %57 : vector<256xf32> to vector<1x256xf32>
    %cst_22 = arith.constant dense<0.000000e+00> : vector<256xf32>
    %59 = vector.multi_reduction <add>, %54, %cst_22 [0] : vector<8x256xf32> to vector<256xf32>
    %60 = vector.shape_cast %59 : vector<256xf32> to vector<1x256xf32>
    %cst_23 = arith.constant dense<0.000000e+00> : vector<256xf32>
    %61 = vector.multi_reduction <add>, %49, %cst_23 [0] : vector<8x256xf32> to vector<256xf32>
    %62 = vector.shape_cast %61 : vector<256xf32> to vector<1x256xf32>
    %c0_24 = arith.constant 0 : index
    %63 = memref.load %arg2[%c0_24] : memref<2xf32, #tpu.memory_space<smem>>
    %c1 = arith.constant 1 : index
    %64 = memref.load %arg2[%c1] : memref<2xf32, #tpu.memory_space<smem>>
    %65 = vector.broadcast %64 : f32 to vector<1x256xf32>
    %66 = arith.mulf %65, %56 : vector<1x256xf32>
    %67 = vector.broadcast %63 : f32 to vector<1x256xf32>
    %68 = arith.mulf %67, %58 : vector<1x256xf32>
    %69 = arith.addf %66, %68 : vector<1x256xf32>
    %cst_25 = arith.constant 0.000000e+00 : f32
    %70 = vector.broadcast %cst_25 : f32 to vector<1x256xf32>
    %71 = arith.subf %70, %69 : vector<1x256xf32>
    %cst_26 = arith.constant 4.8828125E-4 : f32
    %72 = vector.broadcast %cst_26 : f32 to vector<1x256xf32>
    %73 = arith.mulf %71, %72 : vector<1x256xf32>
    %cst_27 = arith.constant 5.2083336E-4 : f32
    %74 = vector.broadcast %cst_27 : f32 to vector<1x256xf32>
    %75 = arith.mulf %60, %74 : vector<1x256xf32>
    %cst_28 = arith.constant 5.2083336E-4 : f32
    %76 = vector.broadcast %cst_28 : f32 to vector<1x256xf32>
    %77 = arith.mulf %62, %76 : vector<1x256xf32>
    %78 = arith.addf %75, %77 : vector<1x256xf32>
    %cst_29 = arith.constant 1.000000e-01 : f32
    %79 = vector.broadcast %cst_29 : f32 to vector<1x256xf32>
    %80 = arith.mulf %79, %78 : vector<1x256xf32>
    %81 = arith.addf %73, %80 : vector<1x256xf32>
    %c0_30 = arith.constant 0 : index
    %c0_31 = arith.constant 0 : index
    %c0_32 = arith.constant 0 : index
    %82 = vector.load %arg7[%c0_30, %c0_31, %c0_32] : memref<1x1x256xf32, #tpu.memory_space<vmem>>, vector<1x1x256xf32>
    %83 = vector.shape_cast %81 : vector<1x256xf32> to vector<1x1x256xf32>
    %84 = arith.addf %82, %83 : vector<1x1x256xf32>
    %c0_33 = arith.constant 0 : index
    %c0_34 = arith.constant 0 : index
    %c0_35 = arith.constant 0 : index
    %85 = vector.load %arg7[%c0_33, %c0_34, %c0_35] : memref<1x1x256xf32, #tpu.memory_space<vmem>>, vector<1x1x256xf32>
    tpu.vector_store %arg7[%c0_33, %c0_34, %c0_35], %84 {strides = array<i32>} : memref<1x1x256xf32, #tpu.memory_space<vmem>>, vector<1x1x256xf32>,
    return
  }
  func.func @transform_0(%arg0: i32, %arg1: i32) -> i32 {
    %c0_i32 = arith.constant 0 : i32
    %c0_i32_0 = arith.constant 0 : i32
    return %c0_i32 : i32
  }
  func.func @transform_1(%arg0: i32, %arg1: i32) -> (i32, i32) {
    %c0_i32 = arith.constant 0 : i32
    %c0_i32_0 = arith.constant 0 : i32
    %c0_i32_1 = arith.constant 0 : i32
    return %c0_i32, %c0_i32_0 : i32, i32
  }
  func.func @transform_2(%arg0: i32, %arg1: i32) -> (i32, i32) {
    %c0_i32 = arith.constant 0 : i32
    %c0_i32_0 = arith.constant 0 : i32
    %c0_i32_1 = arith.constant 0 : i32
    return %c0_i32, %c0_i32_0 : i32, i32
  }
  func.func @transform_3(%arg0: i32, %arg1: i32) -> (i32, i32) {
    %c1_i32 = arith.constant 1 : i32
    %0 = arith.muli %arg0, %c1_i32 : i32
    %1 = arith.addi %0, %arg1 : i32
    %c0_i32 = arith.constant 0 : i32
    %c0_i32_0 = arith.constant 0 : i32
    return %1, %c0_i32 : i32, i32
  }
  func.func @transform_4(%arg0: i32, %arg1: i32) -> (i32, i32) {
    %c1_i32 = arith.constant 1 : i32
    %0 = arith.muli %arg0, %c1_i32 : i32
    %1 = arith.addi %0, %arg1 : i32
    %c0_i32 = arith.constant 0 : i32
    %c0_i32_0 = arith.constant 0 : i32
    return %1, %c0_i32 : i32, i32
  }
  func.func @transform_5(%arg0: i32, %arg1: i32) -> (i32, i32, i32) {
    %c0_i32 = arith.constant 0 : i32
    %c0_i32_0 = arith.constant 0 : i32
    %c0_i32_1 = arith.constant 0 : i32
    return %arg0, %c0_i32, %c0_i32_0 : i32, i32, i32
  }
}

</mosaic_0001>

<llo_original>
// kernel: tpu_custom_call.1
$region0: #{tpu_custom_call.1}
  #allocation0 [shape = 'u32[]', space=smem, size = 0x4, offset = 0x4, fixed_abs, tag = 'smem constant byte address 0x4 - core index']
  #allocation1 [shape = 'u32[144,128]{1,0:T(1,128)}', space=vmem, size = 0x12000, scoped, tag = 'internal scratch']
  %s0 = inlined_call_operand.hbm [shape: f32[2], index: 0, kind: input, shape index: {}]
  %s1 = inlined_call_operand.vmem [shape: f32[1,256], index: 1, kind: input, shape index: {}]
  %s2 = inlined_call_operand.vmem [shape: f32[1,256], index: 2, kind: input, shape index: {}]
  %s3 = inlined_call_operand.hbm [shape: f32[16,256], index: 3, kind: input, shape index: {}]
  %s4 = inlined_call_operand.hbm [shape: f32[16,256], index: 4, kind: input, shape index: {}]
  %s5 = inlined_call_operand.hbm [shape: f32[2,1,256], index: 5, kind: output, shape index: {}]
  %s6 = sld [smem:[#allocation0]]
  $region69: #{tpu_custom_call.1} parent=0
    _
  %s8 = ssub.s32 1, %s6
  %s9 = scalar_select 0, %s8, %s6
  $region1: #{tpu_custom_call.1} parent=0
    #allocation2 [shape = 'u8[512]{0}', space=smem, size = 0x200, scoped, tag = 'input window, operand 0, single buffered']
    #allocation3 [shape = 's32[2]{0}', space=sflag, size = 0x8, scoped, tag = 'scoped memory for tpu_custom_call.1']
    #allocation4 [shape = 's32[2]{0}', space=sflag, size = 0x8, scoped, tag = 'scoped memory for tpu_custom_call.1']
    #allocation5 [shape = 's32[2]{0}', space=sflag, size = 0x8, scoped, tag = 'scoped memory for tpu_custom_call.1']
    #allocation6 [shape = 'u8[16384]{0}', space=vmem, size = 0x4000, scoped, tag = 'input window, operand 3']
    #allocation7 [shape = 'u8[16384]{0}', space=vmem, size = 0x4000, scoped, tag = 'input window, operand 4']
    #allocation8 [shape = 's32[2]{0}', space=sflag, size = 0x8, scoped, tag = 'scoped memory for tpu_custom_call.1']
    #allocation9 [shape = 'u8[2048]{0}', space=vmem, size = 0x800, scoped, tag = 'output window, operand 0']
    %10 = vsyncpa [#allocation5], 0
    %11 = vsyncpa [#allocation3], 0
    %s12 = scalar_lea.sflag [#allocation3], 1
    %13 = vsyncpa %s12, 0
    %14 = vsyncpa [#allocation8], 0
    %s15 = scalar_lea.sflag [#allocation8], 1
    %16 = vsyncpa %s15, 0
    %17 = vsyncpa [#allocation4], 0
    %s18 = scalar_lea.sflag [#allocation4], 1
    %19 = vsyncpa %s18, 0
    loop: start=0, step=1, limit=4
    $region2: #{tpu_custom_call.1} parent=1 // loop_pre_header
      _
    $region3: #{tpu_custom_call.1} parent=1 // loop_header
      %s21 = sphi 0, %s25
      %p22 = scmp.ge.s32.totalorder %s21, 4
      %s28 = sphi 0, %s40
      %s29 = sphi 0, %s36
      %s30 = sphi 0, %s28
      %s31 = sphi 0, %s29
      %s32 = sphi 0, %s30
      %s33 = sphi 0, %s31
      %s41 = sphi 0, %s41
      %s43 = sphi 0, %s41
      %s44 = sphi 0, %s43
      %s58 = sphi 0, %s44
      %s62 = sphi 0, %s62
      %s64 = sphi 0, %s62
      %s65 = sphi 0, %s64
      %s79 = sphi 0, %s65
      %s83 = sphi 0, %s83
      %s85 = sphi 0, %s83
      %s86 = sphi 0, %s85
      %s100 = sphi 0, %s86
      %s108 = sphi 0, %s110
      %s111 = sphi 0, %s108
      %s112 = sphi 0, %s111
      %s128 = sphi 0, %s112
      %s136 = sphi 0, %s138
      %s139 = sphi 0, %s136
      %s140 = sphi 0, %s139
      %s156 = sphi 0, %s140
      %s162 = sphi 0, %s164
      %s165 = sphi 0, %s162
      %s166 = sphi 0, %s165
      %s182 = sphi 0, %s166
    $region4: #{tpu_custom_call.1} parent=1 // loop_header_branch
      %24 = sbr.rel (%p22) target = $region8
    $region5: #{tpu_custom_call.1} parent=1 // loop_body
      %s26 = ssub.s32 %s21, 1
      %s27 = ssub.s32 %s21, 2
      %s34 = sadd.s32 1, %s29
      %p35 = scmp.ge.s32.totalorder %s34, 1
      %s36 = scalar_select %p35, 0, %s34
      %s37 = sadd.s32 1, %s28
      %s38 = scalar_select %p35, %s37, %s28
      %p39 = scmp.ge.s32.totalorder %s38, 2
      %s40 = scalar_select %p39, 0, %s38
      %s42 = sadd.s32 %s41, 1
      %p45 = scmp.eq.s32.totalorder %s21, 1
      %p46 = scmp.ne.s32.totalorder %s41, %s43
      %p47 = scmp.eq.s32.totalorder %s21, 0
      %p48 = por %p46, %p47
      %p49 = scmp.ne.s32.totalorder %s41, %s43
      %p50 = scmp.eq.s32.totalorder %s26, 1
      %p51 = por %p49, %p50
      %p52 = scmp.ne.s32.totalorder %s43, %s44
      %p53 = scmp.eq.s32.totalorder %s26, 0
      %p54 = por %p52, %p53
      %p55 = scmp.ne.s32.totalorder %s43, %s44
      %p56 = scmp.eq.s32.totalorder %s27, 1
      %p57 = por %p55, %p56
      %p59 = scmp.ne.s32.totalorder %s44, %s58
      %p60 = scmp.eq.s32.totalorder %s27, 0
      %p61 = por %p59, %p60
      %s63 = sadd.s32 %s62, 1
      %p66 = scmp.eq.s32.totalorder %s21, 1
      %p67 = scmp.ne.s32.totalorder %s62, %s64
      %p68 = scmp.eq.s32.totalorder %s21, 0
      %p69 = por %p67, %p68
      %p70 = scmp.ne.s32.totalorder %s62, %s64
      %p71 = scmp.eq.s32.totalorder %s26, 1
      %p72 = por %p70, %p71
      %p73 = scmp.ne.s32.totalorder %s64, %s65
      %p74 = scmp.eq.s32.totalorder %s26, 0
      %p75 = por %p73, %p74
      %p76 = scmp.ne.s32.totalorder %s64, %s65
      %p77 = scmp.eq.s32.totalorder %s27, 1
      %p78 = por %p76, %p77
      %p80 = scmp.ne.s32.totalorder %s65, %s79
      %p81 = scmp.eq.s32.totalorder %s27, 0
      %p82 = por %p80, %p81
      %s84 = sadd.s32 %s83, 1
      %p87 = scmp.eq.s32.totalorder %s21, 1
      %p88 = scmp.ne.s32.totalorder %s83, %s85
      %p89 = scmp.eq.s32.totalorder %s21, 0
      %p90 = por %p88, %p89
      %p91 = scmp.ne.s32.totalorder %s83, %s85
      %p92 = scmp.eq.s32.totalorder %s26, 1
      %p93 = por %p91, %p92
      %p94 = scmp.ne.s32.totalorder %s85, %s86
      %p95 = scmp.eq.s32.totalorder %s26, 0
      %p96 = por %p94, %p95
      %p97 = scmp.ne.s32.totalorder %s85, %s86
      %p98 = scmp.eq.s32.totalorder %s27, 1
      %p99 = por %p97, %p98
      %p101 = scmp.ne.s32.totalorder %s86, %s100
      %p102 = scmp.eq.s32.totalorder %s27, 0
      %p103 = por %p101, %p102
      %s104 = sadd.s32 %s28, %s29
      %s105 = sadd.s32 %s40, %s36
      %s106 = ssub.s32 %s104, %s105
      %p107 = scmp.eq.s32.totalorder %s106, 0
      %s109 = sadd.s32 %s108, 1
      %s110 = scalar_select %p107, %s108, %s109
      %p113 = pneg %p107
      %p114 = scmp.eq.s32.totalorder %s21, 1
      %p115 = por %p113, %p114
      %p116 = scmp.ne.s32.totalorder %s108, %s111
      %p117 = scmp.eq.s32.totalorder %s21, 0
      %p118 = por %p116, %p117
      %p119 = scmp.ne.s32.totalorder %s108, %s111
      %p120 = scmp.eq.s32.totalorder %s26, 1
      %p121 = por %p119, %p120
      %p122 = scmp.ne.s32.totalorder %s111, %s112
      %p123 = scmp.eq.s32.totalorder %s26, 0
      %p124 = por %p122, %p123
      %p125 = scmp.ne.s32.totalorder %s111, %s112
      %p126 = scmp.eq.s32.totalorder %s27, 1
      %p127 = por %p125, %p126
      %p129 = scmp.ne.s32.totalorder %s112, %s128
      %p130 = scmp.eq.s32.totalorder %s27, 0
      %p131 = por %p129, %p130
      %s132 = sadd.s32 %s28, %s29
      %s133 = sadd.s32 %s40, %s36
      %s134 = ssub.s32 %s132, %s133
      %p135 = scmp.eq.s32.totalorder %s134, 0
      %s137 = sadd.s32 %s136, 1
      %s138 = scalar_select %p135, %s136, %s137
      %p141 = pneg %p135
      %p142 = scmp.eq.s32.totalorder %s21, 1
      %p143 = por %p141, %p142
      %p144 = scmp.ne.s32.totalorder %s136, %s139
      %p145 = scmp.eq.s32.totalorder %s21, 0
      %p146 = por %p144, %p145
      %p147 = scmp.ne.s32.totalorder %s136, %s139
      %p148 = scmp.eq.s32.totalorder %s26, 1
      %p149 = por %p147, %p148
      %p150 = scmp.ne.s32.totalorder %s139, %s140
      %p151 = scmp.eq.s32.totalorder %s26, 0
      %p152 = por %p150, %p151
      %p153 = scmp.ne.s32.totalorder %s139, %s140
      %p154 = scmp.eq.s32.totalorder %s27, 1
      %p155 = por %p153, %p154
      %p157 = scmp.ne.s32.totalorder %s140, %s156
      %p158 = scmp.eq.s32.totalorder %s27, 0
      %p159 = por %p157, %p158
      %s160 = ssub.s32 %s28, %s40
      %p161 = scmp.eq.s32.totalorder %s160, 0
      %s163 = sadd.s32 %s162, 1
      %s164 = scalar_select %p161, %s162, %s163
      %p167 = pneg %p161
      %p168 = scmp.eq.s32.totalorder %s21, 1
      %p169 = por %p167, %p168
      %p170 = scmp.ne.s32.totalorder %s162, %s165
      %p171 = scmp.eq.s32.totalorder %s21, 0
      %p172 = por %p170, %p171
      %p173 = scmp.ne.s32.totalorder %s162, %s165
      %p174 = scmp.eq.s32.totalorder %s26, 1
      %p175 = por %p173, %p174
      %p176 = scmp.ne.s32.totalorder %s165, %s166
      %p177 = scmp.eq.s32.totalorder %s26, 0
      %p178 = por %p176, %p177
      %p179 = scmp.ne.s32.totalorder %s165, %s166
      %p180 = scmp.eq.s32.totalorder %s27, 1
      %p181 = por %p179, %p180
      %p183 = scmp.ne.s32.totalorder %s166, %s182
      %p184 = scmp.eq.s32.totalorder %s27, 0
      %p185 = por %p183, %p184
      %p186 = scmp.le.s32.totalorder 1, %s21
      %p187 = scmp.lt.s32.totalorder %s21, 3
      %p188 = pnand %p186, %p187
      %p189 = pneg %p188
      // Predicated region
      $region9: #{tpu_custom_call.1} parent=5 // pred_check
        _
      $region10: #{tpu_custom_call.1} parent=5 // pred_check_branch
        %191 = sbr.rel (%p188) target = $region12
      $region11: #{tpu_custom_call.1} parent=5 // pred_region
        %s192 = ssub.s32 %s21, 1
        // Predicated region
        $region13: #{tpu_custom_call.1} parent=11 // pred_check
          %p193 = pneg %p54
        $region14: #{tpu_custom_call.1} parent=11 // pred_check_branch
          %195 = sbr.rel (%p193) target = $region16
        $region15: #{tpu_custom_call.1} parent=11 // pred_region
          %s197 = ssub.s32 16, 16
          %198 = vsyncadd [#allocation5], %s197
          %201 = dma.hbm_to_smem %s0, 16, [#allocation2], [#allocation5]
        $region16: #{tpu_custom_call.1} parent=11 // pred_fallthru
          _
        // Predicated region
        $region17: #{tpu_custom_call.1} parent=11 // pred_check
          %p202 = pneg %p75
        $region18: #{tpu_custom_call.1} parent=11 // pred_check_branch
          %204 = sbr.rel (%p202) target = $region20
        $region19: #{tpu_custom_call.1} parent=11 // pred_region
          _
        $region20: #{tpu_custom_call.1} parent=11 // pred_fallthru
          _
        // Predicated region
        $region21: #{tpu_custom_call.1} parent=11 // pred_check
          %p205 = pneg %p96
        $region22: #{tpu_custom_call.1} parent=11 // pred_check_branch
          %207 = sbr.rel (%p205) target = $region24
        $region23: #{tpu_custom_call.1} parent=11 // pred_region
          _
        $region24: #{tpu_custom_call.1} parent=11 // pred_fallthru
          _
      $region12: #{tpu_custom_call.1} parent=5 // pred_fallthru
        _
      %p208 = scmp.lt.s32.totalorder %s21, 2
      // Predicated region
      $region25: #{tpu_custom_call.1} parent=5 // pred_check
        %p209 = pneg %p208
      $region26: #{tpu_custom_call.1} parent=5 // pred_check_branch
        %211 = sbr.rel (%p209) target = $region28
      $region27: #{tpu_custom_call.1} parent=5 // pred_region
        // Predicated region
        $region29: #{tpu_custom_call.1} parent=27 // pred_check
          %p212 = pneg %p118
        $region30: #{tpu_custom_call.1} parent=27 // pred_check_branch
          %214 = sbr.rel (%p212) target = $region32
        $region31: #{tpu_custom_call.1} parent=27 // pred_region
          %s215 = sand.u32 %s108, 1
          %s216 = scalar_lea.sflag [#allocation3], %s215
          %s217 = sand.u32 %s108, 1
          %s218 = smul.addr %s217, 16
          %s219 = scalar_lea.vmem [#allocation6], %s218
          %s220 = sadd.s32 %s28, %s29
          %s222 = ssub.s32 256, 256
          %223 = vsyncadd %s216, %s222
          %s224 = smul.addr %s220, 2
          %s225 = smul.addr %s224, 128
          %s226 = scalar_lea.hbm %s3, %s225
          %s228 = sshll.u32 %s219, 4
          %s229 = int_to_ptr.vmem [resolvable:$true] %s228
          %231 = dma.hbm_to_vmem [thread:$0]  %s226, 256, %s229, %s216
        $region32: #{tpu_custom_call.1} parent=27 // pred_fallthru
          _
        // Predicated region
        $region33: #{tpu_custom_call.1} parent=27 // pred_check
          %p232 = pneg %p146
        $region34: #{tpu_custom_call.1} parent=27 // pred_check_branch
          %234 = sbr.rel (%p232) target = $region36
        $region35: #{tpu_custom_call.1} parent=27 // pred_region
          %s235 = sand.u32 %s136, 1
          %s236 = scalar_lea.sflag [#allocation8], %s235
          %s237 = sand.u32 %s136, 1
          %s238 = smul.addr %s237, 16
          %s239 = scalar_lea.vmem [#allocation7], %s238
          %s240 = sadd.s32 %s28, %s29
          %s242 = ssub.s32 256, 256
          %243 = vsyncadd %s236, %s242
          %s244 = smul.addr %s240, 2
          %s245 = smul.addr %s244, 128
          %s246 = scalar_lea.hbm %s4, %s245
          %s248 = sshll.u32 %s239, 4
          %s249 = int_to_ptr.vmem [resolvable:$true] %s248
          %251 = dma.hbm_to_vmem [thread:$0]  %s246, 256, %s249, %s236
        $region36: #{tpu_custom_call.1} parent=27 // pred_fallthru
          _
      $region28: #{tpu_custom_call.1} parent=5 // pred_fallthru
        _
      %p252 = scmp.le.s32.totalorder 1, %s21
      %p253 = scmp.lt.s32.totalorder %s21, 3
      %p254 = pnand %p252, %p253
      %p255 = pneg %p254
      // Predicated region
      $region37: #{tpu_custom_call.1} parent=5 // pred_check
        _
      $region38: #{tpu_custom_call.1} parent=5 // pred_check_branch
        %257 = sbr.rel (%p254) target = $region40
      $region39: #{tpu_custom_call.1} parent=5 // pred_region
        %s258 = ssub.s32 %s21, 1
        // Predicated region
        $region41: #{tpu_custom_call.1} parent=39 // pred_check
          %p259 = pneg %p54
        $region42: #{tpu_custom_call.1} parent=39 // pred_check_branch
          %261 = sbr.rel (%p259) target = $region44
        $region43: #{tpu_custom_call.1} parent=39 // pred_region
          %262 = dma.done [#allocation5], 16
        $region44: #{tpu_custom_call.1} parent=39 // pred_fallthru
          _
        %s263 = sand.u32 %s111, 1
        %s264 = scalar_lea.sflag [#allocation3], %s263
        %s265 = sand.u32 %s111, 1
        %s266 = smul.addr %s265, 16
        %s267 = scalar_lea.vmem [#allocation6], %s266
        // Predicated region
        $region45: #{tpu_custom_call.1} parent=39 // pred_check
          %p268 = pneg %p124
        $region46: #{tpu_custom_call.1} parent=39 // pred_check_branch
          %270 = sbr.rel (%p268) target = $region48
        $region47: #{tpu_custom_call.1} parent=39 // pred_region
          %271 = dma.done %s264, 256
        $region48: #{tpu_custom_call.1} parent=39 // pred_fallthru
          _
        %s272 = sand.u32 %s139, 1
        %s273 = scalar_lea.sflag [#allocation8], %s272
        %s274 = sand.u32 %s139, 1
        %s275 = smul.addr %s274, 16
        %s276 = scalar_lea.vmem [#allocation7], %s275
        // Predicated region
        $region49: #{tpu_custom_call.1} parent=39 // pred_check
          %p277 = pneg %p152
        $region50: #{tpu_custom_call.1} parent=39 // pred_check_branch
          %279 = sbr.rel (%p277) target = $region52
        $region51: #{tpu_custom_call.1} parent=39 // pred_region
          %280 = dma.done %s273, 256
        $region52: #{tpu_custom_call.1} parent=39 // pred_fallthru
          _
        %281 = sfence
        %p282 = pneg %p54
        %p283 = pneg %p51
        %p284 = pneg %p75
        %p285 = pneg %p72
        %p286 = pneg %p96
        %p287 = pneg %p93
        %s288 = sand.u32 %s111, 1
        %s289 = scalar_lea.sflag [#allocation3], %s288
        %s290 = sand.u32 %s111, 1
        %s291 = smul.addr %s290, 16
        %s292 = scalar_lea.vmem [#allocation6], %s291
        %p293 = pneg %p124
        %p294 = pneg %p121
        %s295 = sand.u32 %s139, 1
        %s296 = scalar_lea.sflag [#allocation8], %s295
        %s297 = sand.u32 %s139, 1
        %s298 = smul.addr %s297, 16
        %s299 = scalar_lea.vmem [#allocation7], %s298
        %p300 = pneg %p152
        %p301 = pneg %p149
        %p302 = pneg %p178
        %p303 = pneg %p175
        %s304 = sand.u32 %s165, 1
        %s305 = scalar_lea.sflag [#allocation4], %s304
        %s306 = sand.u32 %s165, 1
        %s307 = smul.addr %s306, 2
        %s308 = scalar_lea.vmem [#allocation9], %s307
        %s309 = sadd.s32 %s30, %s31
        %s310 = sadd.s32 %s30, %s31
        %p311 = scmp.eq.s32.totalorder %s31, 0
        // Predicated region
        $region53: #{tpu_custom_call.1} parent=39 // pred_check
          %p312 = pneg %p311
        $region54: #{tpu_custom_call.1} parent=39 // pred_check_branch
          %314 = sbr.rel (%p312) target = $region56
        $region55: #{tpu_custom_call.1} parent=39 // pred_region
          %v315 = vlaneseq
          %vm316 = vcmp.ge.s32.totalorder %v315, 0
          %vm317 = vcmp.lt.s32.totalorder %v315, 256
          %vm318 = vmand %vm316, %vm317
          %319 = vst.msk [vmem:[%s308] sm:$0x3] %vm318, 0.0
        $region56: #{tpu_custom_call.1} parent=39 // pred_fallthru
          _
        %v320 = vld [vmem:[%s267] sm:$0xff]
        %v321 = vld [vmem:[%s267 + $0x8] sm:$0xff]
        %v322 = vld [vmem:[%s276] sm:$0xff]
        %v323 = vld [vmem:[%s276 + $0x8] sm:$0xff]
        %v324 = vand.u32 2147483647, %v320
        %v325 = vand.u32 2147483647, %v321
        %v326 = vsub.f32 0.0, %v324
        %v327 = vsub.f32 0.0, %v325
        %v328 = vmul.f32 %v326, 1.442695
        %v329 = vpow.pop %v328
        %v330 = vmul.f32 %v327, 1.442695
        %v331 = vpow.pop %v330
        %v332 = vadd.f32 %v329, 1.0
        %v333 = vadd.f32 %v331, 1.0
        %v334 = vlog2.pop %v332
        %v335 = vmul.f32 %v334, 0.6931472
        %v336 = vlog2.pop %v333
        %v337 = vmul.f32 %v336, 0.6931472
        %v338 = vmin.f32 %v320, 0.0
        %v339 = vmin.f32 %v321, 0.0
        %v340 = vsub.f32 %v338, %v335
        %v341 = vsub.f32 %v339, %v337
        %v342 = vmax.f32 %v340, -18.420681
        %v343 = vmax.f32 %v341, -18.420681
        %v344 = vsub.f32 0.0, %v320
        %v345 = vsub.f32 0.0, %v321
        %v346 = vmin.f32 %v344, 0.0
        %v347 = vmin.f32 %v345, 0.0
        %v348 = vsub.f32 %v346, %v335
        %v349 = vsub.f32 %v347, %v337
        %v350 = vmax.f32 %v348, -18.420681
        %v351 = vmax.f32 %v349, -18.420681
        %v352 = vrcp.pop %v332
        %v353 = vrcp.pop %v333
        %v354 = vmul.f32 %v332, %v352
        %v355 = vmul.f32 %v333, %v353
        %v356 = vsub.f32 2.0, %v354
        %v357 = vsub.f32 2.0, %v355
        %v358 = vmul.f32 %v352, %v356
        %v359 = vmul.f32 %v353, %v357
        %vm360 = vcmp.ge.f32.partialorder %v320, 0.0
        %vm361 = vcmp.ge.f32.partialorder %v321, 0.0
        %v362 = vmul.f32 %v329, %v358
        %v363 = vmul.f32 %v331, %v359
        %v364 = vsel %vm360, %v358, %v362
        %v365 = vsel %vm361, %v359, %v363
        %v366 = vmax.f32 %v364, 1e-08
        %v367 = vmax.f32 %v365, 1e-08
        %v368 = vmin.f32 %v366, 1.0
        %v369 = vmin.f32 %v367, 1.0
        %v370 = vmul.f32 %v322, %v342
        %v371 = vmul.f32 %v323, %v343
        %v372 = vsub.f32 1.0, %v322
        %v373 = vsub.f32 1.0, %v323
        %v374 = vmul.f32 %v372, %v350
        %v375 = vmul.f32 %v373, %v351
        %376 = vrot.lane.b32.xlu0 %v368, 1
        %v377 = vpop.permute.xlu0 %376
        %378 = vrot.lane.b32.xlu0 %v369, 1
        %v379 = vpop.permute.xlu0 %378
        %v380 = vlaneseq
        %v381 = vand.u32 %v380, 127
        %vm382 = vcmp.lt.s32.totalorder %v381, 1
        %v383 = vsel %vm382, %v377, %v379
        %v384 = vsel %vm382, %v379, %v377
        %385 = vrot.lane.b32.xlu0 %v368, 16
        %v386 = vpop.permute.xlu0 %385
        %387 = vrot.lane.b32.xlu0 %v369, 16
        %v388 = vpop.permute.xlu0 %387
        %vm389 = vcmp.lt.s32.totalorder %v381, 16
        %v390 = vsel %vm389, %v386, %v388
        %v391 = vsel %vm389, %v388, %v386
        %v392 = vsub.f32 %v368, %v384
        %v393 = vsub.f32 %v369, %v383
        %v394 = vand.u32 2147483647, %v392
        %v395 = vand.u32 2147483647, %v393
        %v396 = vld [vmem:[%s2] sm:$0x3]
        %v398 = vlaneseq
        %v399 = vshrl.u32 %v398, 7
        %v400 = vsub.s32 0, %v399
        %v401 = vrot.slane %v396, %v400
        %v402 = vlaneseq
        %v403 = vshrl.u32 %v402, 7
        %v404 = vsub.s32 1, %v403
        %v405 = vrot.slane %v396, %v404
        %v408 = vmul.f32 %v394, %v401
        %v409 = vmul.f32 %v395, %v405
        %v410 = vsub.f32 %v368, %v391
        %v411 = vsub.f32 %v369, %v390
        %v412 = vand.u32 2147483647, %v410
        %v413 = vand.u32 2147483647, %v411
        %v414 = vld [vmem:[%s1] sm:$0x3]
        %v416 = vlaneseq
        %v417 = vshrl.u32 %v416, 7
        %v418 = vsub.s32 0, %v417
        %v419 = vrot.slane %v414, %v418
        %v420 = vlaneseq
        %v421 = vshrl.u32 %v420, 7
        %v422 = vsub.s32 1, %v421
        %v423 = vrot.slane %v414, %v422
        %v426 = vmul.f32 %v412, %v419
        %v427 = vmul.f32 %v413, %v423
        %v428 = vrot.slane %v370, 4
        %v429 = vadd.f32 %v370, %v428
        %v430 = vrot.slane %v429, 2
        %v431 = vadd.f32 %v429, %v430
        %v432 = vrot.slane %v431, 1
        %v433 = vadd.f32 %v431, %v432
        %v434 = vrot.slane %v371, 4
        %v435 = vadd.f32 %v371, %v434
        %v436 = vrot.slane %v435, 2
        %v437 = vadd.f32 %v435, %v436
        %v438 = vrot.slane %v437, 1
        %v439 = vadd.f32 %v437, %v438
        %v440 = vrot.slane %v374, 4
        %v441 = vadd.f32 %v374, %v440
        %v442 = vrot.slane %v441, 2
        %v443 = vadd.f32 %v441, %v442
        %v444 = vrot.slane %v443, 1
        %v445 = vadd.f32 %v443, %v444
        %v446 = vrot.slane %v375, 4
        %v447 = vadd.f32 %v375, %v446
        %v448 = vrot.slane %v447, 2
        %v449 = vadd.f32 %v447, %v448
        %v450 = vrot.slane %v449, 1
        %v451 = vadd.f32 %v449, %v450
        %v452 = vrot.slane %v426, 4
        %v453 = vadd.f32 %v426, %v452
        %v454 = vrot.slane %v453, 2
        %v455 = vadd.f32 %v453, %v454
        %v456 = vrot.slane %v455, 1
        %v457 = vadd.f32 %v455, %v456
        %v458 = vrot.slane %v427, 4
        %v459 = vadd.f32 %v427, %v458
        %v460 = vrot.slane %v459, 2
        %v461 = vadd.f32 %v459, %v460
        %v462 = vrot.slane %v461, 1
        %v463 = vadd.f32 %v461, %v462
        %v464 = vrot.slane %v408, 4
        %v465 = vadd.f32 %v408, %v464
        %v466 = vrot.slane %v465, 2
        %v467 = vadd.f32 %v465, %v466
        %v468 = vrot.slane %v467, 1
        %v469 = vadd.f32 %v467, %v468
        %v470 = vrot.slane %v409, 4
        %v471 = vadd.f32 %v409, %v470
        %v472 = vrot.slane %v471, 2
        %v473 = vadd.f32 %v471, %v472
        %v474 = vrot.slane %v473, 1
        %v475 = vadd.f32 %v473, %v474
        %s476 = sld [smem:[#allocation2]]
        %s477 = sld [smem:[#allocation2 + $0x1]]
        %v478 = vstv %s477
        %v479 = vmul.f32 %v478, %v433
        %v480 = vmul.f32 %v478, %v439
        %v481 = vstv %s476
        %v482 = vmul.f32 %v481, %v445
        %v483 = vmul.f32 %v481, %v451
        %v484 = vadd.f32 %v479, %v482
        %v485 = vadd.f32 %v480, %v483
        %v486 = vsub.f32 0.0, %v484
        %v487 = vsub.f32 0.0, %v485
        %v488 = vmul.f32 %v486, 0.00048828125
        %v489 = vmul.f32 %v487, 0.00048828125
        %v490 = vmul.f32 %v457, 0.00052083336
        %v491 = vmul.f32 %v463, 0.00052083336
        %v492 = vmul.f32 %v469, 0.00052083336
        %v493 = vmul.f32 %v475, 0.00052083336
        %v494 = vadd.f32 %v490, %v492
        %v495 = vadd.f32 %v491, %v493
        %v496 = vmul.f32 %v494, 0.1
        %v497 = vmul.f32 %v495, 0.1
        %v498 = vadd.f32 %v488, %v496
        %v499 = vadd.f32 %v489, %v497
        %v500 = vld [vmem:[%s308] sm:$0x3]
        %v503 = vcombine.low %v498, %v499
        %v505 = vunpack.c.l.s4 1966171168
        %v506 = vunpack.c.0.s8 %v505
        %v507 = vlaneseq
        %v508 = vshrl.u32 %v507, 7
        %v509 = vsub.s32 %v506, %v508
        %v510 = vrot.slane %v503, %v509
        %v512 = vunpack.c.l.s4 1966171168
        %v513 = vunpack.c.0.s8 %v512
        %v514 = vlaneseq
        %v515 = vshrl.u32 %v514, 7
        %v516 = vsub.s32 %v513, %v515
        %v517 = vrot.slane %v510, %v516
        %v519 = vadd.f32 %v500, %v517
        %v520 = vlaneseq
        %vm521 = vcmp.ge.s32.totalorder %v520, 0
        %vm522 = vcmp.lt.s32.totalorder %v520, 256
        %vm523 = vmand %vm521, %vm522
        %524 = vst.msk [vmem:[%s308] sm:$0x3] %vm523, %v519
        %s525 = sand.u32 %s165, 1
        %s526 = scalar_lea.sflag [#allocation4], %s525
        %s527 = sand.u32 %s165, 1
        %s528 = smul.addr %s527, 2
        %s529 = scalar_lea.vmem [#allocation9], %s528
        // Predicated region
        $region57: #{tpu_custom_call.1} parent=39 // pred_check
          %p530 = pneg %p175
        $region58: #{tpu_custom_call.1} parent=39 // pred_check_branch
          %532 = sbr.rel (%p530) target = $region60
        $region59: #{tpu_custom_call.1} parent=39 // pred_region
          %s534 = ssub.s32 32, 32
          %535 = vsyncadd %s526, %s534
          %s536 = smul.addr %s30, 2
          %s537 = smul.addr %s536, 16
          %s538 = scalar_lea.hbm %s5, %s537
          %s540 = sshll.u32 %s529, 4
          %s541 = int_to_ptr.vmem [resolvable:$true] %s540
          %543 = dma.vmem_to_hbm [thread:$0]  %s541, 32, %s538, %s526
        $region60: #{tpu_custom_call.1} parent=39 // pred_fallthru
          _
      $region40: #{tpu_custom_call.1} parent=5 // pred_fallthru
        _
      %p544 = scmp.le.s32.totalorder 2, %s21
      // Predicated region
      $region61: #{tpu_custom_call.1} parent=5 // pred_check
        %p545 = pneg %p544
      $region62: #{tpu_custom_call.1} parent=5 // pred_check_branch
        %547 = sbr.rel (%p545) target = $region64
      $region63: #{tpu_custom_call.1} parent=5 // pred_region
        %s548 = ssub.s32 %s21, 2
        // Predicated region
        $region65: #{tpu_custom_call.1} parent=63 // pred_check
          %p549 = pneg %p181
        $region66: #{tpu_custom_call.1} parent=63 // pred_check_branch
          %551 = sbr.rel (%p549) target = $region68
        $region67: #{tpu_custom_call.1} parent=63 // pred_region
          %s552 = sand.u32 %s166, 1
          %s553 = scalar_lea.sflag [#allocation4], %s552
          %s554 = sand.u32 %s166, 1
          %s555 = smul.addr %s554, 2
          %s556 = scalar_lea.vmem [#allocation9], %s555
          %557 = dma.done %s553, 32
        $region68: #{tpu_custom_call.1} parent=63 // pred_fallthru
          _
      $region64: #{tpu_custom_call.1} parent=5 // pred_fallthru
        _
    $region6: #{tpu_custom_call.1} parent=1 // loop_footer
      %s25 = sadd.s32 1, %s21
    $region7: #{tpu_custom_call.1} parent=1 // loop_footer_branch
      %20 = sbr.rel target = $region3
    $region8: #{tpu_custom_call.1} parent=1 // loop_exit
      _
    %558 = vsyncpa [#allocation3], 1
    %s559 = scalar_lea.sflag [#allocation3], 1
    %560 = vsyncpa %s559, 1
    %561 = vsyncpa [#allocation8], 1
    %s562 = scalar_lea.sflag [#allocation8], 1
    %563 = vsyncpa %s562, 1
    %564 = vsyncpa [#allocation4], 1
    %s565 = scalar_lea.sflag [#allocation4], 1
    %566 = vsyncpa %s565, 1
    %567 = vsyncpa [#allocation5], 1
    %s568 = scalar_lea.sflag [#allocation5], 1
    %569 = vsyncpa %s568, 1

</llo_original>
